<compile_context>
chip_gen: v6e
topology: v6e:2x2x1
jax: 0.10.0
libtpu: 0.0.40
codegen_flags: <defaults>
</compile_context>

<pallas_src>
import jax
import jax.numpy as jnp
from jax.experimental import pallas as pl
from jax.experimental.pallas import tpu as pltpu

ALPHA = 0.25
GAMMA = 2.0

_LANES = 1024          # lane-dense slab width (multiple of 128)
_MAX_BLOCK_ROWS = 512  # 512 x 1024 x 4B = 2 MiB per block per stream


def _focal_loss_kernel(logits_ref, targets_ref, out_ref):
    x = logits_ref[...].astype(jnp.float32)
    t = targets_ref[...].astype(jnp.float32)

    # Single transcendental exp, reused for both BCE and sigmoid recovery.
    e = jnp.exp(-jnp.abs(x))
    one_plus_e = 1.0 + e

    # Numerically stable BCE-with-logits:
    #   ce = max(x, 0) - x*t + log(1 + exp(-|x|))
    ce = jnp.maximum(x, 0.0) - x * t + jnp.log(one_plus_e)

    # p = sigmoid(x) recovered without a second exp:
    #   x >= 0: p = 1/(1+e) ;  x < 0: p = e/(1+e)
    inv = 1.0 / one_plus_e
    p = jnp.where(x >= 0.0, inv, e * inv)

    # 1 - p_t  where  p_t = p*t + (1-p)*(1-t)   (algebraically simplified)
    one_minus_pt = p + t - 2.0 * (p * t)
    # alpha_t = alpha*t + (1-alpha)*(1-t)       (algebraically simplified)
    alpha_t = (1.0 - ALPHA) + (2.0 * ALPHA - 1.0) * t

    # gamma = 2 -> square
    loss = (alpha_t * ce) * (one_minus_pt * one_minus_pt)
    out_ref[...] = loss.astype(out_ref.dtype)


def _focal_jax(x, t):
    """Pure-JAX epilogue for a ragged tail (< _LANES elements)."""
    p = jax.nn.sigmoid(x)
    ce = jnp.maximum(x, 0.0) - x * t + jnp.log1p(jnp.exp(-jnp.abs(x)))
    p_t = p * t + (1 - p) * (1 - t)
    alpha_t = ALPHA * t + (1 - ALPHA) * (1 - t)
    return alpha_t * ce * (1 - p_t) ** GAMMA


def _focal_pallas_2d(l2d, t2d, out_dtype):
    """Run the elementwise kernel on a (rows, _LANES) lane-dense slab."""
    rows = l2d.shape[0]

    # Pick the largest block that still gives >= 2 grid steps when possible
    # (keeps both v7x TensorCores busy); never below 8 sublanes.
    block_rows = _MAX_BLOCK_ROWS
    while block_rows > 8 and block_rows * 2 > rows:
        block_rows //= 2

    # Last block may run past `rows`: Pallas pads the OOB reads and masks the
    # OOB writes, which is safe for a purely elementwise kernel.
    num_blocks = pl.cdiv(rows, block_rows)

    spec = pl.BlockSpec((block_rows, _LANES), lambda i: (i, 0))

    n = rows * _LANES
    bytes_accessed = n * (
        jnp.dtype(l2d.dtype).itemsize
        + jnp.dtype(t2d.dtype).itemsize
        + jnp.dtype(out_dtype).itemsize
    )
    cost = pl.CostEstimate(
        flops=14 * n,
        transcendentals=2 * n,
        bytes_accessed=bytes_accessed,
    )

    return pl.pallas_call(
        _focal_loss_kernel,
        out_shape=jax.ShapeDtypeStruct((rows, _LANES), out_dtype),
        grid_spec=pl.GridSpec(
            grid=(num_blocks,),
            in_specs=[spec, spec],
            out_specs=spec,
        ),
        compiler_params=pltpu.CompilerParams(
            dimension_semantics=("parallel",),
            vmem_limit_bytes=32 * 1024 * 1024,
        ),
        cost_estimate=cost,
    )(l2d, t2d)


def focal_with_logits_loss(logits, targets):
    """Elementwise sigmoid focal loss (alpha=0.25, gamma=2, reduction='none')."""
    assert logits.shape == targets.shape
    orig_shape = logits.shape
    out_dtype = logits.dtype

    total = 1
    for d in orig_shape:
        total *= d
    if total == 0:
        return jnp.zeros(orig_shape, out_dtype)

    flat_l = logits.reshape(-1)
    flat_t = targets.reshape(-1)

    main = (total // _LANES) * _LANES
    tail = total - main

    if tail == 0:
        # Zero-copy fast path: contiguous reshape to a lane-dense slab, no
        # padding, no output slice.
        rows = total // _LANES
        out2d = _focal_pallas_2d(
            flat_l.reshape(rows, _LANES), flat_t.reshape(rows, _LANES), out_dtype
        )
        return out2d.reshape(orig_shape)

    # Ragged path: bulk through the kernel, tiny (< 1024 elem) pure-JAX tail.
    # TODO(synk): the bulk slice + concat still copy once; acceptable per
    # review, and only hit when total is not a multiple of 1024.
    pieces = []
    if main > 0:
        rows = main // _LANES
        out2d = _focal_pallas_2d(
            flat_l[:main].reshape(rows, _LANES),
            flat_t[:main].reshape(rows, _LANES),
            out_dtype,
        )
        pieces.append(out2d.reshape(-1))
    pieces.append(
        _focal_jax(
            flat_l[main:].astype(jnp.float32), flat_t[main:].astype(jnp.float32)
        ).astype(out_dtype)
    )
    flat_out = pieces[0] if len(pieces) == 1 else jnp.concatenate(pieces)
    return flat_out.reshape(orig_shape)


def _reference(logits, targets, alpha=ALPHA, gamma=GAMMA):
    # Pure-JAX reference matching torchvision.ops.sigmoid_focal_loss
    p = jax.nn.sigmoid(logits)
    ce = jnp.maximum(logits, 0.0) - logits * targets + jnp.log1p(
        jnp.exp(-jnp.abs(logits))
    )
    p_t = p * targets + (1 - p) * (1 - targets)
    loss = ce * (1 - p_t) ** gamma
    alpha_t = alpha * targets + (1 - alpha) * (1 - targets)
    return alpha_t * loss


if __name__ == "__main__":
    key = jax.random.PRNGKey(0)
    k1, k2, k3, k4 = jax.random.split(key, 4)

    # Small NCHW-shaped example: batch=2, channels=4, spatial=16x16
    B, C, H, W = 2, 4, 16, 16
    logits = jax.random.normal(k1, (B, C, H, W), dtype=jnp.float32) * 2.0
    targets = (jax.random.uniform(k2, (B, C, H, W)) > 0.5).astype(jnp.float32)

    out = focal_with_logits_loss(logits, targets)
    out = jax.block_until_ready(out)

    ref = _reference(logits, targets)
    assert out.shape == logits.shape
    assert jnp.allclose(out, ref, atol=1e-5, rtol=1e-5), "mismatch vs reference"

    # Also exercise the ragged-tail path (total not a multiple of 1024).
    logits2 = jax.random.normal(k3, (3, 5, 7, 11), dtype=jnp.float32) * 2.0
    targets2 = (jax.random.uniform(k4, (3, 5, 7, 11)) > 0.5).astype(jnp.float32)
    out2 = jax.block_until_ready(focal_with_logits_loss(logits2, targets2))
    ref2 = _reference(logits2, targets2)
    assert out2.shape == logits2.shape
    assert jnp.allclose(out2, ref2, atol=1e-5, rtol=1e-5), "mismatch (ragged)"

    print("KERNEL_OK")
</pallas_src>

<mosaic_0001>
module attributes {stable_mosaic.version = 11 : i64} {
  func.func @_focal_loss_kernel(%arg0: i32, %arg1: memref<8x1024xf32, #tpu.memory_space<vmem>>, %arg2: memref<8x1024xf32, #tpu.memory_space<vmem>>, %arg3: memref<8x1024xf32, #tpu.memory_space<vmem>>) attributes {dimension_semantics = [#tpu.dimension_semantics<parallel>], iteration_bounds = array<i64: 1>, scalar_prefetch = 0 : i64, scratch_operands = 0 : i64, tpu.core_type = #tpu.core_type<tc>, window_params = [{transform_indices = @transform_0, window_bounds = array<i64: 8, 1024>}, {transform_indices = @transform_1, window_bounds = array<i64: 8, 1024>}, {transform_indices = @transform_2, window_bounds = array<i64: 8, 1024>}]} {
    %c0 = arith.constant 0 : index
    %c0_0 = arith.constant 0 : index
    %0 = vector.load %arg1[%c0, %c0_0] : memref<8x1024xf32, #tpu.memory_space<vmem>>, vector<8x1024xf32>
    %c0_1 = arith.constant 0 : index
    %c0_2 = arith.constant 0 : index
    %1 = vector.load %arg2[%c0_1, %c0_2] : memref<8x1024xf32, #tpu.memory_space<vmem>>, vector<8x1024xf32>
    %2 = math.absf %0 : vector<8x1024xf32>
    %cst = arith.constant 0.000000e+00 : f32
    %3 = vector.broadcast %cst : f32 to vector<8x1024xf32>
    %4 = arith.subf %3, %2 : vector<8x1024xf32>
    %5 = math.exp %4 : vector<8x1024xf32>
    %cst_3 = arith.constant 1.000000e+00 : f32
    %6 = vector.broadcast %cst_3 : f32 to vector<8x1024xf32>
    %7 = arith.addf %6, %5 : vector<8x1024xf32>
    %cst_4 = arith.constant 0.000000e+00 : f32
    %8 = vector.broadcast %cst_4 : f32 to vector<8x1024xf32>
    %9 = arith.maximumf %0, %8 : vector<8x1024xf32>
    %10 = arith.mulf %0, %1 : vector<8x1024xf32>
    %11 = arith.subf %9, %10 : vector<8x1024xf32>
    %12 = math.log %7 : vector<8x1024xf32>
    %13 = arith.addf %11, %12 : vector<8x1024xf32>
    %cst_5 = arith.constant 1.000000e+00 : f32
    %14 = vector.broadcast %cst_5 : f32 to vector<8x1024xf32>
    %15 = arith.divf %14, %7 : vector<8x1024xf32>
    %cst_6 = arith.constant 0.000000e+00 : f32
    %16 = vector.broadcast %cst_6 : f32 to vector<8x1024xf32>
    %17 = arith.cmpf oge, %0, %16 : vector<8x1024xf32>
    %18 = arith.mulf %5, %15 : vector<8x1024xf32>
    %19 = arith.select %17, %15, %18 : vector<8x1024xi1>, vector<8x1024xf32>
    %20 = arith.addf %19, %1 : vector<8x1024xf32>
    %21 = arith.mulf %19, %1 : vector<8x1024xf32>
    %cst_7 = arith.constant 2.000000e+00 : f32
    %22 = vector.broadcast %cst_7 : f32 to vector<8x1024xf32>
    %23 = arith.mulf %22, %21 : vector<8x1024xf32>
    %24 = arith.subf %20, %23 : vector<8x1024xf32>
    %cst_8 = arith.constant -5.000000e-01 : f32
    %25 = vector.broadcast %cst_8 : f32 to vector<8x1024xf32>
    %26 = arith.mulf %25, %1 : vector<8x1024xf32>
    %cst_9 = arith.constant 7.500000e-01 : f32
    %27 = vector.broadcast %cst_9 : f32 to vector<8x1024xf32>
    %28 = arith.addf %27, %26 : vector<8x1024xf32>
    %29 = arith.mulf %28, %13 : vector<8x1024xf32>
    %30 = arith.mulf %24, %24 : vector<8x1024xf32>
    %31 = arith.mulf %29, %30 : vector<8x1024xf32>
    %c0_10 = arith.constant 0 : index
    %c0_11 = arith.constant 0 : index
    %32 = vector.load %arg3[%c0_10, %c0_11] : memref<8x1024xf32, #tpu.memory_space<vmem>>, vector<8x1024xf32>
    tpu.vector_store %arg3[%c0_10, %c0_11], %31 {strides = array<i32>} : memref<8x1024xf32, #tpu.memory_space<vmem>>, vector<8x1024xf32>,
    return
  }
  func.func @transform_0(%arg0: i32) -> (i32, i32) {
    %c0_i32 = arith.constant 0 : i32
    %c0_i32_0 = arith.constant 0 : i32
    return %arg0, %c0_i32 : i32, i32
  }
  func.func @transform_1(%arg0: i32) -> (i32, i32) {
    %c0_i32 = arith.constant 0 : i32
    %c0_i32_0 = arith.constant 0 : i32
    return %arg0, %c0_i32 : i32, i32
  }
  func.func @transform_2(%arg0: i32) -> (i32, i32) {
    %c0_i32 = arith.constant 0 : i32
    %c0_i32_0 = arith.constant 0 : i32
    return %arg0, %c0_i32 : i32, i32
  }
}

</mosaic_0001>

<llo_original>
// kernel: tpu_custom_call.1
$region0: #{tpu_custom_call.1}
  #allocation0 [shape = 'u32[]', space=smem, size = 0x4, offset = 0x4, fixed_abs, tag = 'smem constant byte address 0x4 - core index']
  #allocation1 [shape = 'u32[144,128]{1,0:T(1,128)}', space=vmem, size = 0x12000, scoped, tag = 'internal scratch']
  %s0 = inlined_call_operand.hbm [shape: f32[2,1024], index: 0, kind: input, shape index: {}]
  %s1 = inlined_call_operand.hbm [shape: f32[2,1024], index: 1, kind: input, shape index: {}]
  %s2 = inlined_call_operand.hbm [shape: f32[2,1024], index: 2, kind: output, shape index: {}]
  %s3 = sld [smem:[#allocation0]]
  $region26: #{tpu_custom_call.1} parent=0
    _
  %s5 = ssub.s32 1, %s3
  %s6 = scalar_select 0, %s5, %s3
  $region1: #{tpu_custom_call.1} parent=0
    #allocation2 [shape = 'u8[32768]{0}', space=vmem, size = 0x8000, scoped, tag = 'input window, operand 0, single buffered']
    #allocation3 [shape = 's32[1]{0}', space=sflag, size = 0x4, scoped, tag = 'scoped memory for tpu_custom_call.1']
    #allocation4 [shape = 's32[1]{0}', space=sflag, size = 0x4, scoped, tag = 'scoped memory for tpu_custom_call.1']
    #allocation5 [shape = 'u8[32768]{0}', space=vmem, size = 0x8000, scoped, tag = 'input window, operand 1, single buffered']
    #allocation6 [shape = 's32[1]{0}', space=sflag, size = 0x4, scoped, tag = 'scoped memory for tpu_custom_call.1']
    #allocation7 [shape = 'u8[32768]{0}', space=vmem, size = 0x8000, scoped, tag = 'output window, operand 0, single buffered']
    %7 = vsyncpa [#allocation3], 0
    %8 = vsyncpa [#allocation6], 0
    %9 = vsyncpa [#allocation4], 0
    // Predicated region
    $region2: #{tpu_custom_call.1} parent=1 // pred_check
      _
    $region3: #{tpu_custom_call.1} parent=1 // pred_check_branch
      %11 = sbr.rel (0) target = $region5
    $region4: #{tpu_custom_call.1} parent=1 // pred_region
      %s13 = ssub.s32 1024, 256
      %14 = vsyncadd [#allocation3], %s13
      %s15 = sshll.u32 [#allocation2], 4
      %s16 = int_to_ptr.vmem [resolvable:$true] %s15
      %21 = dma.hbm_to_vmem [thread:$0]  %s0, 256, %s16, [#allocation3], 256, 256, 16
    $region5: #{tpu_custom_call.1} parent=1 // pred_fallthru
      _
    // Predicated region
    $region6: #{tpu_custom_call.1} parent=1 // pred_check
      _
    $region7: #{tpu_custom_call.1} parent=1 // pred_check_branch
      %23 = sbr.rel (0) target = $region9
    $region8: #{tpu_custom_call.1} parent=1 // pred_region
      %s25 = ssub.s32 1024, 256
      %26 = vsyncadd [#allocation6], %s25
      %s27 = sshll.u32 [#allocation5], 4
      %s28 = int_to_ptr.vmem [resolvable:$true] %s27
      %33 = dma.hbm_to_vmem [thread:$0]  %s1, 256, %s28, [#allocation6], 256, 256, 16
    $region9: #{tpu_custom_call.1} parent=1 // pred_fallthru
      _
    // Predicated region
    $region10: #{tpu_custom_call.1} parent=1 // pred_check
      _
    $region11: #{tpu_custom_call.1} parent=1 // pred_check_branch
      %35 = sbr.rel (0) target = $region13
    $region12: #{tpu_custom_call.1} parent=1 // pred_region
      %36 = dma.done [#allocation3], 1024
    $region13: #{tpu_custom_call.1} parent=1 // pred_fallthru
      _
    // Predicated region
    $region14: #{tpu_custom_call.1} parent=1 // pred_check
      _
    $region15: #{tpu_custom_call.1} parent=1 // pred_check_branch
      %38 = sbr.rel (0) target = $region17
    $region16: #{tpu_custom_call.1} parent=1 // pred_region
      %39 = dma.done [#allocation6], 1024
    $region17: #{tpu_custom_call.1} parent=1 // pred_fallthru
      _
    %v40 = vld [vmem:[#allocation2] sm:$0xff]
    %v41 = vld [vmem:[#allocation2 + $0x8] sm:$0xff]
    %v42 = vld [vmem:[#allocation2 + $0x10] sm:$0xff]
    %v43 = vld [vmem:[#allocation2 + $0x18] sm:$0xff]
    %v44 = vld [vmem:[#allocation2 + $0x20] sm:$0xff]
    %v45 = vld [vmem:[#allocation2 + $0x28] sm:$0xff]
    %v46 = vld [vmem:[#allocation2 + $0x30] sm:$0xff]
    %v47 = vld [vmem:[#allocation2 + $0x38] sm:$0xff]
    %v48 = vld [vmem:[#allocation5] sm:$0xff]
    %v49 = vld [vmem:[#allocation5 + $0x8] sm:$0xff]
    %v50 = vld [vmem:[#allocation5 + $0x10] sm:$0xff]
    %v51 = vld [vmem:[#allocation5 + $0x18] sm:$0xff]
    %v52 = vld [vmem:[#allocation5 + $0x20] sm:$0xff]
    %v53 = vld [vmem:[#allocation5 + $0x28] sm:$0xff]
    %v54 = vld [vmem:[#allocation5 + $0x30] sm:$0xff]
    %v55 = vld [vmem:[#allocation5 + $0x38] sm:$0xff]
    %v56 = vand.u32 2147483647, %v40
    %v57 = vand.u32 2147483647, %v41
    %v58 = vand.u32 2147483647, %v42
    %v59 = vand.u32 2147483647, %v43
    %v60 = vand.u32 2147483647, %v44
    %v61 = vand.u32 2147483647, %v45
    %v62 = vand.u32 2147483647, %v46
    %v63 = vand.u32 2147483647, %v47
    %v64 = vsub.f32 0.0, %v56
    %v65 = vsub.f32 0.0, %v57
    %v66 = vsub.f32 0.0, %v58
    %v67 = vsub.f32 0.0, %v59
    %v68 = vsub.f32 0.0, %v60
    %v69 = vsub.f32 0.0, %v61
    %v70 = vsub.f32 0.0, %v62
    %v71 = vsub.f32 0.0, %v63
    %v72 = vmul.f32 %v64, 1.442695
    %v73 = vpow.pop %v72
    %v74 = vmul.f32 %v65, 1.442695
    %v75 = vpow.pop %v74
    %v76 = vmul.f32 %v66, 1.442695
    %v77 = vpow.pop %v76
    %v78 = vmul.f32 %v67, 1.442695
    %v79 = vpow.pop %v78
    %v80 = vmul.f32 %v68, 1.442695
    %v81 = vpow.pop %v80
    %v82 = vmul.f32 %v69, 1.442695
    %v83 = vpow.pop %v82
    %v84 = vmul.f32 %v70, 1.442695
    %v85 = vpow.pop %v84
    %v86 = vmul.f32 %v71, 1.442695
    %v87 = vpow.pop %v86
    %v88 = vadd.f32 %v73, 1.0
    %v89 = vadd.f32 %v75, 1.0
    %v90 = vadd.f32 %v77, 1.0
    %v91 = vadd.f32 %v79, 1.0
    %v92 = vadd.f32 %v81, 1.0
    %v93 = vadd.f32 %v83, 1.0
    %v94 = vadd.f32 %v85, 1.0
    %v95 = vadd.f32 %v87, 1.0
    %v96 = vmax.f32 %v40, 0.0
    %v97 = vmax.f32 %v41, 0.0
    %v98 = vmax.f32 %v42, 0.0
    %v99 = vmax.f32 %v43, 0.0
    %v100 = vmax.f32 %v44, 0.0
    %v101 = vmax.f32 %v45, 0.0
    %v102 = vmax.f32 %v46, 0.0
    %v103 = vmax.f32 %v47, 0.0
    %v104 = vmul.f32 %v40, %v48
    %v105 = vmul.f32 %v41, %v49
    %v106 = vmul.f32 %v42, %v50
    %v107 = vmul.f32 %v43, %v51
    %v108 = vmul.f32 %v44, %v52
    %v109 = vmul.f32 %v45, %v53
    %v110 = vmul.f32 %v46, %v54
    %v111 = vmul.f32 %v47, %v55
    %v112 = vsub.f32 %v96, %v104
    %v113 = vsub.f32 %v97, %v105
    %v114 = vsub.f32 %v98, %v106
    %v115 = vsub.f32 %v99, %v107
    %v116 = vsub.f32 %v100, %v108
    %v117 = vsub.f32 %v101, %v109
    %v118 = vsub.f32 %v102, %v110
    %v119 = vsub.f32 %v103, %v111
    %v120 = vlog2.pop %v88
    %v121 = vmul.f32 %v120, 0.6931472
    %v122 = vlog2.pop %v89
    %v123 = vmul.f32 %v122, 0.6931472
    %v124 = vlog2.pop %v90
    %v125 = vmul.f32 %v124, 0.6931472
    %v126 = vlog2.pop %v91
    %v127 = vmul.f32 %v126, 0.6931472
    %v128 = vlog2.pop %v92
    %v129 = vmul.f32 %v128, 0.6931472
    %v130 = vlog2.pop %v93
    %v131 = vmul.f32 %v130, 0.6931472
    %v132 = vlog2.pop %v94
    %v133 = vmul.f32 %v132, 0.6931472
    %v134 = vlog2.pop %v95
    %v135 = vmul.f32 %v134, 0.6931472
    %v136 = vadd.f32 %v112, %v121
    %v137 = vadd.f32 %v113, %v123
    %v138 = vadd.f32 %v114, %v125
    %v139 = vadd.f32 %v115, %v127
    %v140 = vadd.f32 %v116, %v129
    %v141 = vadd.f32 %v117, %v131
    %v142 = vadd.f32 %v118, %v133
    %v143 = vadd.f32 %v119, %v135
    %v144 = vrcp.pop %v88
    %v145 = vmul.f32 1.0, %v144
    %v146 = vrcp.pop %v89
    %v147 = vmul.f32 1.0, %v146
    %v148 = vrcp.pop %v90
    %v149 = vmul.f32 1.0, %v148
    %v150 = vrcp.pop %v91
    %v151 = vmul.f32 1.0, %v150
    %v152 = vrcp.pop %v92
    %v153 = vmul.f32 1.0, %v152
    %v154 = vrcp.pop %v93
    %v155 = vmul.f32 1.0, %v154
    %v156 = vrcp.pop %v94
    %v157 = vmul.f32 1.0, %v156
    %v158 = vrcp.pop %v95
    %v159 = vmul.f32 1.0, %v158
    %vm160 = vcmp.ge.f32.partialorder %v40, 0.0
    %vm161 = vcmp.ge.f32.partialorder %v41, 0.0
    %vm162 = vcmp.ge.f32.partialorder %v42, 0.0
    %vm163 = vcmp.ge.f32.partialorder %v43, 0.0
    %vm164 = vcmp.ge.f32.partialorder %v44, 0.0
    %vm165 = vcmp.ge.f32.partialorder %v45, 0.0
    %vm166 = vcmp.ge.f32.partialorder %v46, 0.0
    %vm167 = vcmp.ge.f32.partialorder %v47, 0.0
    %v168 = vmul.f32 %v73, %v145
    %v169 = vmul.f32 %v75, %v147
    %v170 = vmul.f32 %v77, %v149
    %v171 = vmul.f32 %v79, %v151
    %v172 = vmul.f32 %v81, %v153
    %v173 = vmul.f32 %v83, %v155
    %v174 = vmul.f32 %v85, %v157
    %v175 = vmul.f32 %v87, %v159
    %v176 = vsel %vm160, %v145, %v168
    %v177 = vsel %vm161, %v147, %v169
    %v178 = vsel %vm162, %v149, %v170
    %v179 = vsel %vm163, %v151, %v171
    %v180 = vsel %vm164, %v153, %v172
    %v181 = vsel %vm165, %v155, %v173
    %v182 = vsel %vm166, %v157, %v174
    %v183 = vsel %vm167, %v159, %v175
    %v184 = vadd.f32 %v176, %v48
    %v185 = vadd.f32 %v177, %v49
    %v186 = vadd.f32 %v178, %v50
    %v187 = vadd.f32 %v179, %v51
    %v188 = vadd.f32 %v180, %v52
    %v189 = vadd.f32 %v181, %v53
    %v190 = vadd.f32 %v182, %v54
    %v191 = vadd.f32 %v183, %v55
    %v192 = vmul.f32 %v176, %v48
    %v193 = vmul.f32 %v177, %v49
    %v194 = vmul.f32 %v178, %v50
    %v195 = vmul.f32 %v179, %v51
    %v196 = vmul.f32 %v180, %v52
    %v197 = vmul.f32 %v181, %v53
    %v198 = vmul.f32 %v182, %v54
    %v199 = vmul.f32 %v183, %v55
    %v200 = vmul.f32 %v192, 2.0
    %v201 = vmul.f32 %v193, 2.0
    %v202 = vmul.f32 %v194, 2.0
    %v203 = vmul.f32 %v195, 2.0
    %v204 = vmul.f32 %v196, 2.0
    %v205 = vmul.f32 %v197, 2.0
    %v206 = vmul.f32 %v198, 2.0
    %v207 = vmul.f32 %v199, 2.0
    %v208 = vsub.f32 %v184, %v200
    %v209 = vsub.f32 %v185, %v201
    %v210 = vsub.f32 %v186, %v202
    %v211 = vsub.f32 %v187, %v203
    %v212 = vsub.f32 %v188, %v204
    %v213 = vsub.f32 %v189, %v205
    %v214 = vsub.f32 %v190, %v206
    %v215 = vsub.f32 %v191, %v207
    %v216 = vmul.f32 %v48, -0.5
    %v217 = vmul.f32 %v49, -0.5
    %v218 = vmul.f32 %v50, -0.5
    %v219 = vmul.f32 %v51, -0.5
    %v220 = vmul.f32 %v52, -0.5
    %v221 = vmul.f32 %v53, -0.5
    %v222 = vmul.f32 %v54, -0.5
    %v223 = vmul.f32 %v55, -0.5
    %v224 = vadd.f32 %v216, 0.75
    %v225 = vadd.f32 %v217, 0.75
    %v226 = vadd.f32 %v218, 0.75
    %v227 = vadd.f32 %v219, 0.75
    %v228 = vadd.f32 %v220, 0.75
    %v229 = vadd.f32 %v221, 0.75
    %v230 = vadd.f32 %v222, 0.75
    %v231 = vadd.f32 %v223, 0.75
    %v232 = vmul.f32 %v224, %v136
    %v233 = vmul.f32 %v225, %v137
    %v234 = vmul.f32 %v226, %v138
    %v235 = vmul.f32 %v227, %v139
    %v236 = vmul.f32 %v228, %v140
    %v237 = vmul.f32 %v229, %v141
    %v238 = vmul.f32 %v230, %v142
    %v239 = vmul.f32 %v231, %v143
    %v240 = vmul.f32 %v208, %v208
    %v241 = vmul.f32 %v209, %v209
    %v242 = vmul.f32 %v210, %v210
    %v243 = vmul.f32 %v211, %v211
    %v244 = vmul.f32 %v212, %v212
    %v245 = vmul.f32 %v213, %v213
    %v246 = vmul.f32 %v214, %v214
    %v247 = vmul.f32 %v215, %v215
    %v248 = vmul.f32 %v232, %v240
    %v249 = vmul.f32 %v233, %v241
    %v250 = vmul.f32 %v234, %v242
    %v251 = vmul.f32 %v235, %v243
    %v252 = vmul.f32 %v236, %v244
    %v253 = vmul.f32 %v237, %v245
    %v254 = vmul.f32 %v238, %v246
    %v255 = vmul.f32 %v239, %v247
    %256 = vst [vmem:[#allocation7] sm:$0xff] %v248
    %257 = vst [vmem:[#allocation7 + $0x8] sm:$0xff] %v249
    %258 = vst [vmem:[#allocation7 + $0x10] sm:$0xff] %v250
    %259 = vst [vmem:[#allocation7 + $0x18] sm:$0xff] %v251
    %260 = vst [vmem:[#allocation7 + $0x20] sm:$0xff] %v252
    %261 = vst [vmem:[#allocation7 + $0x28] sm:$0xff] %v253
    %262 = vst [vmem:[#allocation7 + $0x30] sm:$0xff] %v254
    %263 = vst [vmem:[#allocation7 + $0x38] sm:$0xff] %v255
    // Predicated region
    $region18: #{tpu_custom_call.1} parent=1 // pred_check
      _
    $region19: #{tpu_custom_call.1} parent=1 // pred_check_branch
      %265 = sbr.rel (0) target = $region21
    $region20: #{tpu_custom_call.1} parent=1 // pred_region
      %s267 = ssub.s32 1024, 256
      %268 = vsyncadd [#allocation4], %s267
      %s269 = sshll.u32 [#allocation7], 4
      %s270 = int_to_ptr.vmem [resolvable:$true] %s269
      %275 = dma.vmem_to_hbm [thread:$0]  %s270, 256, %s2, [#allocation4], 256, 256, 16
    $region21: #{tpu_custom_call.1} parent=1 // pred_fallthru
      _
    // Predicated region
    $region22: #{tpu_custom_call.1} parent=1 // pred_check
      _
    $region23: #{tpu_custom_call.1} parent=1 // pred_check_branch
      %277 = sbr.rel (0) target = $region25
    $region24: #{tpu_custom_call.1} parent=1 // pred_region
      %278 = dma.done [#allocation4], 1024
    $region25: #{tpu_custom_call.1} parent=1 // pred_fallthru
      _
    %279 = vsyncpa [#allocation3], 1
    %280 = vsyncpa [#allocation6], 1
    %281 = vsyncpa [#allocation4], 1

</llo_original>
